<compile_context>
chip_gen: v6e
topology: v6e:2x2x1
jax: 0.10.0
libtpu: 0.0.40
codegen_flags: <defaults>
</compile_context>

<pallas_src>
import functools
import math

import jax
import jax.numpy as jnp
from jax import lax
from jax.experimental import pallas as pl
from jax.experimental.pallas import tpu as pltpu

NEG_INF = -1e30   # finite "-inf": keeps exp/max NaN-free on padded/masked lanes


def _round_up(x, m):
    return ((x + m - 1) // m) * m


def _pad2d(a, rows, cols):
    r, c = a.shape
    if r == rows and c == cols:
        return a
    return jnp.pad(a, ((0, rows - r), (0, cols - c)))


@functools.lru_cache(maxsize=None)
def _vmem_limit():
    """Generation-gated VMEM budget (v7x: 64 MiB/TC, v5e/v6e: 128 MiB)."""
    cap = 64 * 1024 * 1024
    try:
        cap = int(pltpu.get_tpu_info().vmem_capacity_bytes)
    except Exception:
        pass
    return min((cap * 7) // 8, 112 * 1024 * 1024)


# --------------------------------------------------------------------------
# Tiled matmul + bias (fused QKV projection and the O projection)
# --------------------------------------------------------------------------
def _matmul_bias_kernel(x_ref, w_ref, b_ref, o_ref, acc_ref):
    # x_ref: (tm, tk) bf16, w_ref: (tk, tn) bf16, b_ref: (1, tn) f32
    @pl.when(pl.program_id(2) == 0)
    def _():
        acc_ref[...] = jnp.zeros(acc_ref.shape, jnp.float32)

    acc_ref[...] += jnp.dot(x_ref[...], w_ref[...],
                            preferred_element_type=jnp.float32)

    @pl.when(pl.program_id(2) == pl.num_programs(2) - 1)
    def _():
        o_ref[...] = (acc_ref[...] + b_ref[...]).astype(o_ref.dtype)


def _pick_tk(K, cap=512):
    """Pick a contraction tile that minimizes K padding (multiple of 128)."""
    if K <= cap:
        return K
    best_pad, best_tk = None, None
    for cand in (512, 384, 256, 128):
        pad = _round_up(K, cand) - K
        if best_pad is None or pad < best_pad:
            best_pad, best_tk = pad, cand
    return best_tk


def matmul_bias(x, w, b, *, out_dtype=None, mxu_dtype=jnp.bfloat16,
                tm=512, tn=512, tk_cap=512):
    """y = x @ w + b with x:(M,K), w:(K,N), b:(N,). f32 accumulation on MXU."""
    M, K = x.shape
    Kw, N = w.shape
    assert Kw == K and b.shape == (N,)
    out_dtype = out_dtype if out_dtype is not None else x.dtype

    tm = min(tm, _round_up(M, 8))
    tn = min(tn, _round_up(N, 128))          # lane-dense output stores
    tk = _pick_tk(K, tk_cap)

    Mp, Np, Kp = _round_up(M, tm), _round_up(N, tn), _round_up(K, tk)
    xp = _pad2d(x.astype(mxu_dtype), Mp, Kp)
    wp = _pad2d(w.astype(mxu_dtype), Kp, Np)
    bp = _pad2d(b.astype(jnp.float32).reshape(1, N), 1, Np)

    cost = pl.CostEstimate(
        flops=2 * Mp * Np * Kp,
        transcendentals=0,
        bytes_accessed=(Mp * Kp + Kp * Np) * xp.dtype.itemsize
                       + Mp * Np * jnp.dtype(out_dtype).itemsize)

    out = pl.pallas_call(
        _matmul_bias_kernel,
        out_shape=jax.ShapeDtypeStruct((Mp, Np), out_dtype),
        grid_spec=pltpu.PrefetchScalarGridSpec(
            num_scalar_prefetch=0,
            grid=(Mp // tm, Np // tn, Kp // tk),
            in_specs=[
                pl.BlockSpec((tm, tk), lambda i, j, k: (i, k)),   # x tile
                pl.BlockSpec((tk, tn), lambda i, j, k: (k, j)),   # w tile
                pl.BlockSpec((1, tn), lambda i, j, k: (0, j)),    # bias tile
            ],
            out_specs=pl.BlockSpec((tm, tn), lambda i, j, k: (i, j)),
            scratch_shapes=[pltpu.VMEM((tm, tn), jnp.float32)],
        ),
        compiler_params=pltpu.CompilerParams(
            dimension_semantics=("parallel", "parallel", "arbitrary"),
            vmem_limit_bytes=_vmem_limit()),
        cost_estimate=cost,
    )(xp, wp, bp)

    return out[:M, :N]


# --------------------------------------------------------------------------
# Causal flash attention on a lower-triangle-only grid (scalar prefetch)
# --------------------------------------------------------------------------
def _flash_attn_kernel(qi_ref, kj_ref, q_ref, k_ref, v_ref, o_ref,
                       m_sc, l_sc, acc_sc, *, sm_scale, block):
    t = pl.program_id(1)
    qi = qi_ref[t]
    kj = kj_ref[t]

    # First KV tile of this Q row -> reset the online-softmax state.
    @pl.when(kj == 0)
    def _():
        m_sc[...] = jnp.full(m_sc.shape, NEG_INF, jnp.float32)
        l_sc[...] = jnp.zeros(l_sc.shape, jnp.float32)
        acc_sc[...] = jnp.zeros(acc_sc.shape, jnp.float32)

    def scores():
        # q (blk, D) @ k^T (D, blk) on the MXU, f32 accumulation.
        return lax.dot_general(
            q_ref[...], k_ref[...], (((1,), (1,)), ((), ())),
            preferred_element_type=jnp.float32) * sm_scale

    def online_update(s):
        m_prev = m_sc[...]
        m_new = jnp.maximum(m_prev, s.max(axis=-1, keepdims=True))
        alpha = jnp.exp(m_prev - m_new)
        p = jnp.exp(s - m_new)
        l_sc[...] = alpha * l_sc[...] + p.sum(axis=-1, keepdims=True)
        acc_sc[...] = alpha * acc_sc[...] + lax.dot_general(
            p.astype(v_ref.dtype), v_ref[...], (((1,), (0,)), ((), ())),
            preferred_element_type=jnp.float32)
        m_sc[...] = m_new

    # Interior tile (strictly below the diagonal): no masking needed.
    @pl.when(kj < qi)
    def _():
        online_update(scores())

    # Diagonal tile: apply the causal mask, then finalize this Q row.
    @pl.when(kj == qi)
    def _():
        s = scores()
        row = lax.broadcasted_iota(jnp.int32, (block, block), 0)
        col = lax.broadcasted_iota(jnp.int32, (block, block), 1)
        online_update(jnp.where(row >= col, s, NEG_INF))
        o_ref[...] = (acc_sc[...] *
                      pl.reciprocal(l_sc[...], approx=True)).astype(o_ref.dtype)


def flash_mha(q, k, v, *, sm_scale, block=256):
    """q, k, v: (B*H, T, D) -> causal attention output (B*H, T, D)."""
    BH, T, D = q.shape
    blk = min(block, _round_up(T, 8))
    Tp = _round_up(T, blk)
    if Tp != T:
        pad = ((0, 0), (0, Tp - T), (0, 0))
        q, k, v = jnp.pad(q, pad), jnp.pad(k, pad), jnp.pad(v, pad)

    # Lower-triangle tile enumeration (block_q == block_k == blk).
    nq = Tp // blk
    qi_list = [i for i in range(nq) for _ in range(i + 1)]
    kj_list = [j for i in range(nq) for j in range(i + 1)]
    n_steps = len(qi_list)
    qi_tbl = jnp.asarray(qi_list, jnp.int32)
    kj_tbl = jnp.asarray(kj_list, jnp.int32)

    bytes_el = q.dtype.itemsize
    cost = pl.CostEstimate(
        flops=4 * BH * n_steps * blk * blk * D,                  # causal only
        transcendentals=BH * n_steps * blk * blk,
        bytes_accessed=(2 * BH * Tp * D                          # Q once, O once
                        + 2 * BH * n_steps * blk * D) * bytes_el)  # K/V re-reads

    kernel = functools.partial(_flash_attn_kernel, sm_scale=sm_scale, block=blk)
    # TODO(synk): pack heads per output tile when D < 128 to keep stores
    # lane-dense (vst.msk avoidance on v5e); left as-is for small head_dim.
    out = pl.pallas_call(
        kernel,
        out_shape=jax.ShapeDtypeStruct((BH, Tp, D), q.dtype),
        grid_spec=pltpu.PrefetchScalarGridSpec(
            num_scalar_prefetch=2,                     # qi_tbl, kj_tbl in SMEM
            grid=(BH, n_steps),
            in_specs=[
                pl.BlockSpec((None, blk, D), lambda b, t, qi, kj: (b, qi[t], 0)),
                pl.BlockSpec((None, blk, D), lambda b, t, qi, kj: (b, kj[t], 0)),
                pl.BlockSpec((None, blk, D), lambda b, t, qi, kj: (b, kj[t], 0)),
            ],
            out_specs=pl.BlockSpec((None, blk, D),
                                   lambda b, t, qi, kj: (b, qi[t], 0)),
            scratch_shapes=[
                pltpu.VMEM((blk, 1), jnp.float32),   # running max
                pltpu.VMEM((blk, 1), jnp.float32),   # running denom
                pltpu.VMEM((blk, D), jnp.float32),   # running numerator
            ],
        ),
        compiler_params=pltpu.CompilerParams(
            dimension_semantics=("parallel", "arbitrary"),
            vmem_limit_bytes=_vmem_limit()),
        cost_estimate=cost,
    )(qi_tbl, kj_tbl, q, k, v)
    return out[:, :T, :]


# --------------------------------------------------------------------------
# Full MultiHeadAttention forward
# --------------------------------------------------------------------------
def multi_head_attention(x, fused_params, n_head, *, compute_dtype=jnp.bfloat16):
    """x: (B, T, E); fused_params from fuse_qkv(). Returns (B, T, E) in x.dtype."""
    B, T, E = x.shape
    D = E // n_head
    M = B * T
    x2 = x.reshape(M, E)

    # Fused QKV projection: one lane-dense (M, 3E) bf16 matmul on the MXU.
    qkv = matmul_bias(x2, fused_params["wqkv"], fused_params["bqkv"],
                      out_dtype=compute_dtype, mxu_dtype=compute_dtype)
    q, k, v = jnp.split(qkv, 3, axis=-1)

    # TODO(synk): fold the head split/merge layout into the BlockSpecs instead
    # of XLA transposes (blocked by the (8,128) rule when head_dim < 128).
    def to_heads(t):  # (M, E) -> (B*H, T, D)
        return (t.reshape(B, T, n_head, D)
                 .transpose(0, 2, 1, 3)
                 .reshape(B * n_head, T, D))

    o = flash_mha(to_heads(q), to_heads(k), to_heads(v),
                  sm_scale=1.0 / math.sqrt(D))            # (B*H, T, D) bf16

    o = (o.reshape(B, n_head, T, D)
          .transpose(0, 2, 1, 3)
          .reshape(M, E))

    # Output projection. Dropout is identity at inference.
    # TODO(synk): training-mode dropout (pltpu.prng_random_bits mask) not implemented.
    out = matmul_bias(o, fused_params["wo"], fused_params["bo"],
                      out_dtype=x.dtype, mxu_dtype=compute_dtype)
    return out.reshape(B, T, E)


def init_params(key, embedding_dim):
    """Deterministic init mimicking nn.Linear's uniform(-1/sqrt(fan_in), ...)."""
    E = embedding_dim
    bound = 1.0 / math.sqrt(E)
    ks = jax.random.split(key, 8)
    u = lambda kk, shape: jax.random.uniform(kk, shape, jnp.float32, -bound, bound)
    return {
        "wq": u(ks[0], (E, E)), "bq": u(ks[1], (E,)),
        "wk": u(ks[2], (E, E)), "bk": u(ks[3], (E,)),
        "wv": u(ks[4], (E, E)), "bv": u(ks[5], (E,)),
        "wo": u(ks[6], (E, E)), "bo": u(ks[7], (E,)),
    }


def fuse_qkv(params):
    """Pre-fuse Wq/Wk/Wv (+biases) once at init (not per forward call)."""
    return {
        "wqkv": jnp.concatenate([params["wq"], params["wk"], params["wv"]], axis=1),
        "bqkv": jnp.concatenate([params["bq"], params["bk"], params["bv"]]),
        "wo": params["wo"], "bo": params["bo"],
    }


def reference_mha(x, params, n_head):
    """Pure-JAX f32 reference matching the PyTorch module (eval mode)."""
    B, T, E = x.shape
    D = E // n_head
    q = x @ params["wq"] + params["bq"]
    k = x @ params["wk"] + params["bk"]
    v = x @ params["wv"] + params["bv"]

    def to_heads(t):
        return t.reshape(B, T, n_head, D).transpose(0, 2, 1, 3)

    q, k, v = to_heads(q), to_heads(k), to_heads(v)
    s = jnp.einsum("bhqd,bhkd->bhqk", q, k)
    mask = jnp.tril(jnp.ones((T, T), dtype=bool))
    s = jnp.where(mask, s, -jnp.inf) / math.sqrt(D)   # masked_fill then scale
    a = jax.nn.softmax(s, axis=-1)
    o = jnp.einsum("bhqk,bhkd->bhqd", a, v)
    o = o.transpose(0, 2, 1, 3).reshape(B, T, E)
    return o @ params["wo"] + params["bo"]


if __name__ == "__main__":
    # Small shapes consistent with the module: batch=2, seq=8, embedding_dim=32,
    # n_head=4 -> head_dim=8 (embedding_dim % n_head == 0 as the config requires).
    B, T, E, H = 2, 8, 32, 4
    key = jax.random.PRNGKey(0)
    kx, kp = jax.random.split(key)

    x = jax.random.normal(kx, (B, T, E), jnp.float32)
    params = init_params(kp, E)
    fused = fuse_qkv(params)          # done once at init, reused every forward

    y = multi_head_attention(x, fused, H)
    y = jax.block_until_ready(y)

    y_ref = reference_mha(x, params, H)
    assert y.shape == (B, T, E)
    assert y.dtype == jnp.float32
    # bf16 MXU feeds with f32 accumulation -> bf16-level tolerance vs f32 ref.
    err = float(jnp.max(jnp.abs(y - y_ref)))
    assert err < 5e-2, f"mismatch, max err {err}"

    print("KERNEL_OK")
</pallas_src>

<mosaic_0001>
module attributes {stable_mosaic.version = 11 : i64} {
  func.func @_matmul_bias_kernel(%arg0: i32, %arg1: i32, %arg2: i32, %arg3: memref<16x32xbf16, #tpu.memory_space<vmem>>, %arg4: memref<32x128xbf16, #tpu.memory_space<vmem>>, %arg5: memref<1x128xf32, #tpu.memory_space<vmem>>, %arg6: memref<16x128xbf16, #tpu.memory_space<vmem>>, %arg7: memref<16x128xf32, #tpu.memory_space<vmem>>) attributes {dimension_semantics = [#tpu.dimension_semantics<parallel>, #tpu.dimension_semantics<parallel>, #tpu.dimension_semantics<arbitrary>], iteration_bounds = array<i64: 1, 1, 1>, scalar_prefetch = 0 : i64, scratch_operands = 1 : i64, tpu.core_type = #tpu.core_type<tc>, window_params = [{transform_indices = @transform_0, window_bounds = array<i64: 16, 32>}, {transform_indices = @transform_1, window_bounds = array<i64: 32, 128>}, {transform_indices = @transform_2, window_bounds = array<i64: 1, 128>}, {transform_indices = @transform_3, window_bounds = array<i64: 16, 128>}]} {
    %c0_i32 = arith.constant 0 : i32
    %0 = arith.cmpi eq, %arg2, %c0_i32 : i32
    %1 = arith.extui %0 : i1 to i32
    %c0_i32_0 = arith.constant 0 : i32
    %2 = arith.cmpi ne, %1, %c0_i32_0 : i32
    scf.if %2 {
      %cst_10 = arith.constant 0.000000e+00 : f32
      %12 = vector.broadcast %cst_10 : f32 to vector<16x128xf32>
      %c0_11 = arith.constant 0 : index
      %c0_12 = arith.constant 0 : index
      %13 = vector.load %arg7[%c0_11, %c0_12] : memref<16x128xf32, #tpu.memory_space<vmem>>, vector<16x128xf32>
      tpu.vector_store %arg7[%c0_11, %c0_12], %12 {strides = array<i32>} : memref<16x128xf32, #tpu.memory_space<vmem>>, vector<16x128xf32>,
    } else {
    }
    %c0 = arith.constant 0 : index
    %c0_1 = arith.constant 0 : index
    %3 = vector.load %arg7[%c0, %c0_1] : memref<16x128xf32, #tpu.memory_space<vmem>>, vector<16x128xf32>
    %c0_2 = arith.constant 0 : index
    %c0_3 = arith.constant 0 : index
    %4 = vector.load %arg3[%c0_2, %c0_3] : memref<16x32xbf16, #tpu.memory_space<vmem>>, vector<16x32xbf16>
    %c0_4 = arith.constant 0 : index
    %c0_5 = arith.constant 0 : index
    %5 = vector.load %arg4[%c0_4, %c0_5] : memref<32x128xbf16, #tpu.memory_space<vmem>>, vector<32x128xbf16>
    %cst = arith.constant dense<0.000000e+00> : vector<16x128xf32>
    %6 = tpu.matmul %4, %5, %cst {dimension_numbers = #tpu.dot_dimension_numbers<[1], [0], [0], [1], [0, 0, 1, 1], [], []>} : vector<16x32xbf16>, vector<32x128xbf16>, vector<16x128xf32> -> vector<16x128xf32>
    %7 = arith.addf %3, %6 : vector<16x128xf32>
    %c0_6 = arith.constant 0 : index
    %c0_7 = arith.constant 0 : index
    %8 = vector.load %arg7[%c0_6, %c0_7] : memref<16x128xf32, #tpu.memory_space<vmem>>, vector<16x128xf32>
    tpu.vector_store %arg7[%c0_6, %c0_7], %7 {strides = array<i32>} : memref<16x128xf32, #tpu.memory_space<vmem>>, vector<16x128xf32>,
    %c0_i32_8 = arith.constant 0 : i32
    %9 = arith.cmpi eq, %arg2, %c0_i32_8 : i32
    %10 = arith.extui %9 : i1 to i32
    %c0_i32_9 = arith.constant 0 : i32
    %11 = arith.cmpi ne, %10, %c0_i32_9 : i32
    scf.if %11 {
      %c0_10 = arith.constant 0 : index
      %c0_11 = arith.constant 0 : index
      %12 = vector.load %arg7[%c0_10, %c0_11] : memref<16x128xf32, #tpu.memory_space<vmem>>, vector<16x128xf32>
      %c0_12 = arith.constant 0 : index
      %c0_13 = arith.constant 0 : index
      %13 = vector.load %arg5[%c0_12, %c0_13] : memref<1x128xf32, #tpu.memory_space<vmem>>, vector<1x128xf32>
      %14 = vector.broadcast %13 : vector<1x128xf32> to vector<16x128xf32>
      %15 = arith.addf %12, %14 : vector<16x128xf32>
      %16 = arith.truncf %15 : vector<16x128xf32> to vector<16x128xbf16>
      %c0_14 = arith.constant 0 : index
      %c0_15 = arith.constant 0 : index
      %17 = vector.load %arg6[%c0_14, %c0_15] : memref<16x128xbf16, #tpu.memory_space<vmem>>, vector<16x128xbf16>
      tpu.vector_store %arg6[%c0_14, %c0_15], %16 {strides = array<i32>} : memref<16x128xbf16, #tpu.memory_space<vmem>>, vector<16x128xbf16>,
    } else {
    }
    return
  }
  func.func @transform_0(%arg0: i32, %arg1: i32, %arg2: i32) -> (i32, i32) {
    %c0_i32 = arith.constant 0 : i32
    return %arg0, %arg2 : i32, i32
  }
  func.func @transform_1(%arg0: i32, %arg1: i32, %arg2: i32) -> (i32, i32) {
    %c0_i32 = arith.constant 0 : i32
    return %arg2, %arg1 : i32, i32
  }
  func.func @transform_2(%arg0: i32, %arg1: i32, %arg2: i32) -> (i32, i32) {
    %c0_i32 = arith.constant 0 : i32
    %c0_i32_0 = arith.constant 0 : i32
    return %c0_i32, %arg1 : i32, i32
  }
  func.func @transform_3(%arg0: i32, %arg1: i32, %arg2: i32) -> (i32, i32) {
    %c0_i32 = arith.constant 0 : i32
    return %arg0, %arg1 : i32, i32
  }
}

</mosaic_0001>

<llo_original>
// kernel: tpu_custom_call.1
$region0: #{tpu_custom_call.1}
  #allocation0 [shape = 'u32[]', space=smem, size = 0x4, offset = 0x4, fixed_abs, tag = 'smem constant byte address 0x4 - core index']
  #allocation1 [shape = 'u32[144,128]{1,0:T(1,128)}', space=vmem, size = 0x12000, scoped, tag = 'internal scratch']
  #allocation2 [shape = 'f32[16,128]{1,0:T(8,128)}', space=vmem, size = 0x2000, scoped, tag = 'scratch operand']
  %s0 = inlined_call_operand.hbm [shape: bf16[16,32], index: 0, kind: input, shape index: {}]
  %s1 = inlined_call_operand.hbm [shape: bf16[32,128], index: 1, kind: input, shape index: {}]
  %s2 = inlined_call_operand.vmem [shape: f32[1,128], index: 2, kind: input, shape index: {}]
  %s3 = inlined_call_operand.hbm [shape: bf16[16,128], index: 3, kind: output, shape index: {}]
  %s4 = sld [smem:[#allocation0]]
  $region38: #{tpu_custom_call.1} parent=0
    _
  %s6 = ssub.s32 1, %s4
  %s7 = scalar_select 0, %s6, %s4
  $region1: #{tpu_custom_call.1} parent=0
    #allocation3 [shape = 'u8[4096]{0}', space=vmem, size = 0x1000, scoped, tag = 'input window, operand 0, single buffered']
    #allocation4 [shape = 's32[1]{0}', space=sflag, size = 0x4, scoped, tag = 'scoped memory for tpu_custom_call.1']
    #allocation5 [shape = 's32[1]{0}', space=sflag, size = 0x4, scoped, tag = 'scoped memory for tpu_custom_call.1']
    #allocation6 [shape = 'u8[8192]{0}', space=vmem, size = 0x2000, scoped, tag = 'input window, operand 1, single buffered']
    #allocation7 [shape = 's32[1]{0}', space=sflag, size = 0x4, scoped, tag = 'scoped memory for tpu_custom_call.1']
    #allocation8 [shape = 'u8[4096]{0}', space=vmem, size = 0x1000, scoped, tag = 'output window, operand 0, single buffered']
    %8 = vsyncpa [#allocation4], 0
    %9 = vsyncpa [#allocation7], 0
    %10 = vsyncpa [#allocation5], 0
    // Predicated region
    $region2: #{tpu_custom_call.1} parent=1 // pred_check
      _
    $region3: #{tpu_custom_call.1} parent=1 // pred_check_branch
      %12 = sbr.rel (0) target = $region5
    $region4: #{tpu_custom_call.1} parent=1 // pred_region
      %s14 = ssub.s32 128, 128
      %15 = vsyncadd [#allocation4], %s14
      %s16 = sshll.u32 [#allocation3], 4
      %s17 = int_to_ptr.vmem [resolvable:$true] %s16
      %22 = dma.hbm_to_vmem [thread:$0]  %s0, 128, %s17, [#allocation4], 64, 64, 4
    $region5: #{tpu_custom_call.1} parent=1 // pred_fallthru
      _
    // Predicated region
    $region6: #{tpu_custom_call.1} parent=1 // pred_check
      _
    $region7: #{tpu_custom_call.1} parent=1 // pred_check_branch
      %24 = sbr.rel (0) target = $region9
    $region8: #{tpu_custom_call.1} parent=1 // pred_region
      %s26 = ssub.s32 256, 256
      %27 = vsyncadd [#allocation7], %s26
      %s28 = sshll.u32 [#allocation6], 4
      %s29 = int_to_ptr.vmem [resolvable:$true] %s28
      %34 = dma.hbm_to_vmem [thread:$0]  %s1, 256, %s29, [#allocation7], 64, 64, 4
    $region9: #{tpu_custom_call.1} parent=1 // pred_fallthru
      _
    // Predicated region
    $region10: #{tpu_custom_call.1} parent=1 // pred_check
      _
    $region11: #{tpu_custom_call.1} parent=1 // pred_check_branch
      %36 = sbr.rel (0) target = $region13
    $region12: #{tpu_custom_call.1} parent=1 // pred_region
      _
    $region13: #{tpu_custom_call.1} parent=1 // pred_fallthru
      _
    // Predicated region
    $region14: #{tpu_custom_call.1} parent=1 // pred_check
      _
    $region15: #{tpu_custom_call.1} parent=1 // pred_check_branch
      %38 = sbr.rel (0) target = $region17
    $region16: #{tpu_custom_call.1} parent=1 // pred_region
      %39 = dma.done [#allocation4], 128
    $region17: #{tpu_custom_call.1} parent=1 // pred_fallthru
      _
    // Predicated region
    $region18: #{tpu_custom_call.1} parent=1 // pred_check
      _
    $region19: #{tpu_custom_call.1} parent=1 // pred_check_branch
      %41 = sbr.rel (0) target = $region21
    $region20: #{tpu_custom_call.1} parent=1 // pred_region
      %42 = dma.done [#allocation7], 256
    $region21: #{tpu_custom_call.1} parent=1 // pred_fallthru
      _
    %p44 = scmp.eq.s32.totalorder 0, 0
    // Predicated region
    $region22: #{tpu_custom_call.1} parent=1 // pred_check
      %p45 = pneg %p44
    $region23: #{tpu_custom_call.1} parent=1 // pred_check_branch
      %47 = sbr.rel (%p45) target = $region25
    $region24: #{tpu_custom_call.1} parent=1 // pred_region
      %48 = vst [vmem:[#allocation2] sm:$0xff] 0.0
      %49 = vst [vmem:[#allocation2 + $0x8] sm:$0xff] 0.0
    $region25: #{tpu_custom_call.1} parent=1 // pred_fallthru
      _
    %v50 = vld [vmem:[#allocation2] sm:$0xff]
    %v51 = vld [vmem:[#allocation2 + $0x8] sm:$0xff]
    %v52 = vld [vmem:[#allocation3] sm:$0xf]
    %v53 = vld [vmem:[#allocation3 + $0x4] sm:$0xf]
    %v54 = vld [vmem:[#allocation6] sm:$0xf]
    %v55 = vld [vmem:[#allocation6 + $0x4] sm:$0xf]
    %v56 = vld [vmem:[#allocation6 + $0x8] sm:$0xf]
    %v57 = vld [vmem:[#allocation6 + $0xc] sm:$0xf]
    %v60 = vunpack.c.l.b16 %v52
    %v61 = vunpack.c.l.b16 %v53
    %v62 = vpack.c.b16 %v61, %v60
    %v67 = vunpack.c.l.b16 %v54
    %v68 = vunpack.c.l.b16 %v55
    %v69 = vunpack.c.l.b16 %v56
    %v70 = vunpack.c.l.b16 %v57
    %v71 = vpack.c.b16 %v68, %v67
    %v72 = vpack.c.b16 %v70, %v69
    %vm75 = vcmask 261120
    %v77 = vsel %vm75, %v62, 0
    %79 = vmatprep.subr.bf16.mxu0 0
    %80 = vmatpush1.bf16.msra.mxu0 0
    %81 = vmatprep.subr.bf16.mxu0 0
    %82 = vmatpush1.bf16.msra.mxu0 0
    %83 = vmatprep.subr.bf16.mxu0 0
    %84 = vmatpush1.bf16.msra.mxu0 0
    %85 = vmatprep.subr.bf16.mxu0 0
    %86 = vmatpush1.bf16.msra.mxu0 0
    %87 = vmatprep.subr.bf16.mxu0 0
    %88 = vmatpush1.bf16.msra.mxu0 0
    %89 = vmatprep.subr.bf16.mxu0 0
    %90 = vmatpush1.bf16.msra.mxu0 0
    %91 = vmatprep.subr.bf16.mxu0 0
    %92 = vmatpush1.bf16.msra.mxu0 %v72
    %93 = vmatprep.subr.bf16.mxu0 0
    %94 = vmatpush1.bf16.msra.mxu0 %v71
    %95 = vmatprep.subr.bf16.mxu0 0
    %96 = vmatpush2.bf16.msra.mxu0 0
    %97 = vmatprep.subr.bf16.mxu0 0
    %98 = vmatpush2.bf16.msra.mxu0 0
    %99 = vmatprep.subr.bf16.mxu0 0
    %100 = vmatpush2.bf16.msra.mxu0 0
    %101 = vmatprep.subr.bf16.mxu0 0
    %102 = vmatpush2.bf16.msra.mxu0 0
    %103 = vmatprep.subr.bf16.mxu0 0
    %104 = vmatpush2.bf16.msra.mxu0 0
    %105 = vmatprep.subr.bf16.mxu0 0
    %106 = vmatpush2.bf16.msra.mxu0 0
    %107 = vmatprep.subr.bf16.mxu0 0
    %108 = vmatpush2.bf16.msra.mxu0 0
    %109 = vmatprep.subr.bf16.mxu0 0
    %110 = vmatpush2.bf16.msra.mxu0 0
    %111 = vmatprep.mubr.bf16.mxu0 0
    %112 = vmatmul.mubr.bf16.gmra.mxu0 %v77
    %v113 = vpop.f32.mrf.mxu0
    %v114 = vadd.f32 0.0, %v113
    %v115 = vpop.f32.mrf.mxu0
    %v116 = vpop.f32.mrf.mxu0
    %v117 = vadd.f32 0.0, %v116
    %v118 = vpop.f32.mrf.mxu0
    %119 = vdwg.mxu0
    %v120 = vadd.f32 %v50, %v114
    %v121 = vadd.f32 %v51, %v117
    %122 = vst [vmem:[#allocation2] sm:$0xff] %v120
    %123 = vst [vmem:[#allocation2 + $0x8] sm:$0xff] %v121
    // Predicated region
    $region26: #{tpu_custom_call.1} parent=1 // pred_check
      %p124 = pneg %p44
    $region27: #{tpu_custom_call.1} parent=1 // pred_check_branch
      %126 = sbr.rel (%p124) target = $region29
    $region28: #{tpu_custom_call.1} parent=1 // pred_region
      %v127 = vld [vmem:[#allocation2] sm:$0xff]
      %v128 = vld [vmem:[#allocation2 + $0x8] sm:$0xff]
      %v129 = vld [vmem:[%s2] sm:$0x1]
      %v131 = vlaneseq
      %v132 = vshrl.u32 %v131, 7
      %v133 = vsub.s32 0, %v132
      %v134 = vrot.slane %v129, %v133
      %v136 = vadd.f32 %v127, %v134
      %v137 = vadd.f32 %v128, %v134
      %v138 = vpack.c.bf16 %v137, %v136
      %v140 = vunpack.c.l.b16 %v138
      %v141 = vunpack.c.h.b16 %v138
      %v142 = vpack.c.b16 %v140, %v140
      %v143 = vpack.c.b16 %v141, %v141
      %146 = vst [vmem:[#allocation8] sm:$0xf] %v142
      %147 = vst [vmem:[#allocation8 + $0x4] sm:$0xf] %v143
    $region29: #{tpu_custom_call.1} parent=1 // pred_fallthru
      _
    // Predicated region
    $region30: #{tpu_custom_call.1} parent=1 // pred_check
      _
    $region31: #{tpu_custom_call.1} parent=1 // pred_check_branch
      %149 = sbr.rel (0) target = $region33
    $region32: #{tpu_custom_call.1} parent=1 // pred_region
      %s151 = ssub.s32 128, 128
      %152 = vsyncadd [#allocation5], %s151
      %s153 = sshll.u32 [#allocation8], 4
      %s154 = int_to_ptr.vmem [resolvable:$true] %s153
      %159 = dma.vmem_to_hbm [thread:$0]  %s154, 128, %s3, [#allocation5], 64, 64, 4
    $region33: #{tpu_custom_call.1} parent=1 // pred_fallthru
      _
    // Predicated region
    $region34: #{tpu_custom_call.1} parent=1 // pred_check
      _
    $region35: #{tpu_custom_call.1} parent=1 // pred_check_branch
      %161 = sbr.rel (0) target = $region37
    $region36: #{tpu_custom_call.1} parent=1 // pred_region
      %162 = dma.done [#allocation5], 128
    $region37: #{tpu_custom_call.1} parent=1 // pred_fallthru
      _
    %163 = vsyncpa [#allocation4], 1
    %164 = vsyncpa [#allocation7], 1
    %165 = vsyncpa [#allocation5], 1

</llo_original>
